<compile_context>
chip_gen: v6e
topology: v6e:2x2x1
jax: 0.10.0
libtpu: 0.0.40
codegen_flags: <defaults>
</compile_context>

<pallas_src>
import functools

import jax
import jax.numpy as jnp
from jax.experimental import pallas as pl
from jax.experimental.pallas import tpu as pltpu


def _round_up(v, m):
    return (v + m - 1) // m * m


def _gcn_norm_adj(edge_index, n):
    """Dense D^{-1/2} (A + remaining self loops) D^{-1/2}, A[target, source]."""
    # TODO(synk): for realistic graph sizes (N >~ 4k) keep this sparse
    # (CSR row offsets via scalar prefetch + manual DMA row gather) instead of
    # materializing an O(N^2) dense matrix in the wrapper.
    src, dst = edge_index[0], edge_index[1]
    a = jnp.zeros((n, n), jnp.float32).at[dst, src].add(1.0)
    diag = jnp.diagonal(a)
    # add_remaining_self_loops: only add a self loop where one is missing.
    a = a + jnp.diag(jnp.where(diag > 0.0, 0.0, 1.0))
    deg = a.sum(axis=1)
    dinv = jnp.where(deg > 0.0, jax.lax.rsqrt(deg), 0.0)
    return dinv[:, None] * a * dinv[None, :]


def _crd_kernel(*refs, use_dropout):
    """One (row-tile i, K-tile k) step of  relu((A_hat @ X) @ W + b) * drop."""
    if use_dropout:
        a_ref, x_ref, w_ref, b_ref, s_ref, o_ref, acc_ref = refs
    else:
        a_ref, x_ref, w_ref, b_ref, o_ref, acc_ref = refs
        s_ref = None

    k = pl.program_id(1)

    @pl.when(k == 0)
    def _init():
        acc_ref[...] = jnp.zeros_like(acc_ref)

    # Big contraction against the narrow input-feature width (d_in << d_out).
    # bf16 operands, f32 accumulate.                       (tm, d_in)  -- MXU
    acc_ref[...] += jnp.dot(a_ref[...], x_ref[...],
                            preferred_element_type=jnp.float32)

    @pl.when(k == pl.num_programs(1) - 1)
    def _finalize():
        # Tiny per-row-tile matmul: (tm, d_in) @ (d_in, d_out_p) + bias.
        out = jnp.dot(acc_ref[...], w_ref[...],
                      preferred_element_type=jnp.float32) + b_ref[...]
        out = jnp.maximum(out, 0.0)                 # ReLU               -- VPU
        if s_ref is not None:                       # inverted dropout   -- VPU
            out = out * s_ref[...]                  # scale = keep/(1-p)
        o_ref[...] = out.astype(o_ref.dtype)


def crd_forward(x, edge_index, weight, bias, *, p=0.5, training=False, seed=0):
    """CRD forward: relu(gcn_conv(x, edge_index)) (+ inverted dropout if training)."""
    N, d_in = x.shape
    d_out = weight.shape[1]
    use_dropout = bool(training) and float(p) > 0.0

    a_hat = _gcn_norm_adj(edge_index, N)

    # ---- tiling ------------------------------------------------------------
    if N <= 512:
        tm = tk = N                      # single block each way (full dims OK)
        n_pad = N
    else:
        tm, tk = 256, 512                # multiples of 256 -> fills v6e/v7x MXU
        n_pad = _round_up(N, 512)        # divisible by both tm and tk
    d_out_p = _round_up(d_out, 128)      # lane-dense output (unmasked stores)

    # bf16 for the O(N^2) operands; small params stay f32.
    a_p = jnp.pad(a_hat, ((0, n_pad - N), (0, n_pad - N))).astype(jnp.bfloat16)
    x_p = jnp.pad(x, ((0, n_pad - N), (0, 0))).astype(jnp.bfloat16)
    w_p = jnp.pad(weight.astype(jnp.float32), ((0, 0), (0, d_out_p - d_out)))
    b_p = jnp.pad(bias.astype(jnp.float32),
                  (0, d_out_p - d_out)).reshape(1, d_out_p)

    in_specs = [
        pl.BlockSpec((tm, tk), lambda i, k: (i, k)),          # A_hat tile
        pl.BlockSpec((tk, d_in), lambda i, k: (k, 0)),        # X K-tile
        pl.BlockSpec((d_in, d_out_p), lambda i, k: (0, 0)),   # W (whole)
        pl.BlockSpec((1, d_out_p), lambda i, k: (0, 0)),      # bias row
    ]
    args = [a_p, x_p, w_p, b_p]

    if use_dropout:
        # Keep mask / scale built with jax.random (portable; exact torch RNG
        # stream is not reproducible — Bernoulli(1-p) + 1/(1-p) semantics are).
        keep = jax.random.bernoulli(jax.random.PRNGKey(seed), 1.0 - float(p),
                                    (n_pad, d_out_p))
        scale = keep.astype(jnp.float32) * (1.0 / (1.0 - float(p)))
        in_specs.append(pl.BlockSpec((tm, d_out_p), lambda i, k: (i, 0)))
        args.append(scale)

    kernel = functools.partial(_crd_kernel, use_dropout=use_dropout)

    out = pl.pallas_call(
        kernel,
        out_shape=jax.ShapeDtypeStruct((n_pad, d_out_p), x.dtype),
        grid_spec=pltpu.PrefetchScalarGridSpec(
            num_scalar_prefetch=0,
            grid=(n_pad // tm, n_pad // tk),
            in_specs=in_specs,
            out_specs=pl.BlockSpec((tm, d_out_p), lambda i, k: (i, 0)),
            scratch_shapes=[pltpu.VMEM((tm, d_in), jnp.float32)],
        ),
        compiler_params=pltpu.CompilerParams(
            dimension_semantics=("parallel", "arbitrary"),
            vmem_limit_bytes=48 * 1024 * 1024,
        ),
    )(*args)

    return out[:N, :d_out]


if __name__ == "__main__":
    key = jax.random.PRNGKey(0)
    N, d_in, d_out, p = 16, 8, 32, 0.5

    kx, kw = jax.random.split(key, 2)
    x = jax.random.normal(kx, (N, d_in), jnp.float32)

    # Deterministic glorot-uniform init (GCNConv.reset_parameters), zero bias.
    limit = (6.0 / (d_in + d_out)) ** 0.5
    weight = jax.random.uniform(kw, (d_in, d_out), jnp.float32, -limit, limit)
    bias = jnp.zeros((d_out,), jnp.float32)

    # Deterministic small graph: a directed ring plus a few extra edges.
    ring_src = jnp.arange(N, dtype=jnp.int32)
    ring_dst = (ring_src + 1) % N
    extra_src = jnp.array([0, 3, 7, 11], jnp.int32)
    extra_dst = jnp.array([8, 12, 2, 5], jnp.int32)
    edge_index = jnp.stack([jnp.concatenate([ring_src, extra_src]),
                            jnp.concatenate([ring_dst, extra_dst])])

    # Eval-mode forward (dropout identity, matches module.eval()).
    out_eval = crd_forward(x, edge_index, weight, bias, p=p, training=False)
    jax.block_until_ready(out_eval)
    assert out_eval.shape == (N, d_out)
    assert bool(jnp.all(out_eval >= 0.0))              # post-ReLU

    # Plain-JAX reference (f32) for the eval path; loose tol for bf16 operands.
    a_ref = _gcn_norm_adj(edge_index, N)
    ref = jnp.maximum(a_ref @ (x @ weight) + bias[None, :], 0.0)
    assert bool(jnp.allclose(out_eval, ref, rtol=3e-2, atol=3e-2)), "mismatch vs reference"

    # Training-mode forward exercises the in-kernel dropout scaling path.
    out_train = crd_forward(x, edge_index, weight, bias, p=p,
                            training=True, seed=123)
    jax.block_until_ready(out_train)
    assert out_train.shape == (N, d_out)
    # Every kept element is 2x the eval output (p=0.5), every dropped one is 0.
    ok = (out_train == 0.0) | (jnp.abs(out_train - 2.0 * out_eval)
                               <= 1e-4 * (1.0 + jnp.abs(out_eval)))
    assert bool(jnp.all(ok))

    print("KERNEL_OK")
</pallas_src>

<mosaic_0001>
module attributes {stable_mosaic.version = 11 : i64} {
  func.func @_crd_kernel(%arg0: i32, %arg1: i32, %arg2: memref<16x16xbf16, #tpu.memory_space<vmem>>, %arg3: memref<16x8xbf16, #tpu.memory_space<vmem>>, %arg4: memref<8x128xf32, #tpu.memory_space<vmem>>, %arg5: memref<1x128xf32, #tpu.memory_space<vmem>>, %arg6: memref<16x128xf32, #tpu.memory_space<vmem>>, %arg7: memref<16x8xf32, #tpu.memory_space<vmem>>) attributes {dimension_semantics = [#tpu.dimension_semantics<parallel>, #tpu.dimension_semantics<arbitrary>], iteration_bounds = array<i64: 1, 1>, scalar_prefetch = 0 : i64, scratch_operands = 1 : i64, tpu.core_type = #tpu.core_type<tc>, window_params = [{transform_indices = @transform_0, window_bounds = array<i64: 16, 16>}, {transform_indices = @transform_1, window_bounds = array<i64: 16, 8>}, {pipeline_mode = #tpu.pipeline_mode<synchronous>, transform_indices = @transform_2, window_bounds = array<i64: 8, 128>}, {pipeline_mode = #tpu.pipeline_mode<synchronous>, transform_indices = @transform_3, window_bounds = array<i64: 1, 128>}, {transform_indices = @transform_4, window_bounds = array<i64: 16, 128>}]} {
    %c0_i32 = arith.constant 0 : i32
    %0 = arith.cmpi eq, %arg1, %c0_i32 : i32
    %1 = arith.extui %0 : i1 to i32
    %c0_i32_0 = arith.constant 0 : i32
    %2 = arith.cmpi ne, %1, %c0_i32_0 : i32
    scf.if %2 {
      %cst_10 = arith.constant 0.000000e+00 : f32
      %12 = vector.broadcast %cst_10 : f32 to vector<16x8xf32>
      %c0_11 = arith.constant 0 : index
      %c0_12 = arith.constant 0 : index
      %13 = vector.load %arg7[%c0_11, %c0_12] : memref<16x8xf32, #tpu.memory_space<vmem>>, vector<16x8xf32>
      tpu.vector_store %arg7[%c0_11, %c0_12], %12 {strides = array<i32>} : memref<16x8xf32, #tpu.memory_space<vmem>>, vector<16x8xf32>,
    } else {
    }
    %c0 = arith.constant 0 : index
    %c0_1 = arith.constant 0 : index
    %3 = vector.load %arg7[%c0, %c0_1] : memref<16x8xf32, #tpu.memory_space<vmem>>, vector<16x8xf32>
    %c0_2 = arith.constant 0 : index
    %c0_3 = arith.constant 0 : index
    %4 = vector.load %arg2[%c0_2, %c0_3] : memref<16x16xbf16, #tpu.memory_space<vmem>>, vector<16x16xbf16>
    %c0_4 = arith.constant 0 : index
    %c0_5 = arith.constant 0 : index
    %5 = vector.load %arg3[%c0_4, %c0_5] : memref<16x8xbf16, #tpu.memory_space<vmem>>, vector<16x8xbf16>
    %cst = arith.constant dense<0.000000e+00> : vector<16x8xf32>
    %6 = tpu.matmul %4, %5, %cst {dimension_numbers = #tpu.dot_dimension_numbers<[1], [0], [0], [1], [0, 0, 1, 1], [], []>} : vector<16x16xbf16>, vector<16x8xbf16>, vector<16x8xf32> -> vector<16x8xf32>
    %7 = arith.addf %3, %6 : vector<16x8xf32>
    %c0_6 = arith.constant 0 : index
    %c0_7 = arith.constant 0 : index
    %8 = vector.load %arg7[%c0_6, %c0_7] : memref<16x8xf32, #tpu.memory_space<vmem>>, vector<16x8xf32>
    tpu.vector_store %arg7[%c0_6, %c0_7], %7 {strides = array<i32>} : memref<16x8xf32, #tpu.memory_space<vmem>>, vector<16x8xf32>,
    %c0_i32_8 = arith.constant 0 : i32
    %9 = arith.cmpi eq, %arg1, %c0_i32_8 : i32
    %10 = arith.extui %9 : i1 to i32
    %c0_i32_9 = arith.constant 0 : i32
    %11 = arith.cmpi ne, %10, %c0_i32_9 : i32
    scf.if %11 {
      %c0_10 = arith.constant 0 : index
      %c0_11 = arith.constant 0 : index
      %12 = vector.load %arg7[%c0_10, %c0_11] : memref<16x8xf32, #tpu.memory_space<vmem>>, vector<16x8xf32>
      %c0_12 = arith.constant 0 : index
      %c0_13 = arith.constant 0 : index
      %13 = vector.load %arg4[%c0_12, %c0_13] : memref<8x128xf32, #tpu.memory_space<vmem>>, vector<8x128xf32>
      %cst_14 = arith.constant dense<0.000000e+00> : vector<16x128xf32>
      %14 = tpu.matmul %12, %13, %cst_14 {dimension_numbers = #tpu.dot_dimension_numbers<[1], [0], [0], [1], [0, 0, 1, 1], [], []>} : vector<16x8xf32>, vector<8x128xf32>, vector<16x128xf32> -> vector<16x128xf32>
      %c0_15 = arith.constant 0 : index
      %c0_16 = arith.constant 0 : index
      %15 = vector.load %arg5[%c0_15, %c0_16] : memref<1x128xf32, #tpu.memory_space<vmem>>, vector<1x128xf32>
      %16 = vector.broadcast %15 : vector<1x128xf32> to vector<16x128xf32>
      %17 = arith.addf %14, %16 : vector<16x128xf32>
      %cst_17 = arith.constant 0.000000e+00 : f32
      %18 = vector.broadcast %cst_17 : f32 to vector<16x128xf32>
      %19 = arith.maximumf %17, %18 : vector<16x128xf32>
      %c0_18 = arith.constant 0 : index
      %c0_19 = arith.constant 0 : index
      %20 = vector.load %arg6[%c0_18, %c0_19] : memref<16x128xf32, #tpu.memory_space<vmem>>, vector<16x128xf32>
      tpu.vector_store %arg6[%c0_18, %c0_19], %19 {strides = array<i32>} : memref<16x128xf32, #tpu.memory_space<vmem>>, vector<16x128xf32>,
    } else {
    }
    return
  }
  func.func @transform_0(%arg0: i32, %arg1: i32) -> (i32, i32) {
    %c0_i32 = arith.constant 0 : i32
    return %arg0, %arg1 : i32, i32
  }
  func.func @transform_1(%arg0: i32, %arg1: i32) -> (i32, i32) {
    %c0_i32 = arith.constant 0 : i32
    %c0_i32_0 = arith.constant 0 : i32
    return %arg1, %c0_i32 : i32, i32
  }
  func.func @transform_2(%arg0: i32, %arg1: i32) -> (i32, i32) {
    %c0_i32 = arith.constant 0 : i32
    %c0_i32_0 = arith.constant 0 : i32
    %c0_i32_1 = arith.constant 0 : i32
    return %c0_i32, %c0_i32_0 : i32, i32
  }
  func.func @transform_3(%arg0: i32, %arg1: i32) -> (i32, i32) {
    %c0_i32 = arith.constant 0 : i32
    %c0_i32_0 = arith.constant 0 : i32
    %c0_i32_1 = arith.constant 0 : i32
    return %c0_i32, %c0_i32_0 : i32, i32
  }
  func.func @transform_4(%arg0: i32, %arg1: i32) -> (i32, i32) {
    %c0_i32 = arith.constant 0 : i32
    %c0_i32_0 = arith.constant 0 : i32
    return %arg0, %c0_i32 : i32, i32
  }
}

</mosaic_0001>

<llo_original>
// kernel: tpu_custom_call.1
$region0: #{tpu_custom_call.1}
  #allocation0 [shape = 'u32[]', space=smem, size = 0x4, offset = 0x4, fixed_abs, tag = 'smem constant byte address 0x4 - core index']
  #allocation1 [shape = 'u32[144,128]{1,0:T(1,128)}', space=vmem, size = 0x12000, scoped, tag = 'internal scratch']
  #allocation2 [shape = 'f32[16,8]{1,0:T(8,128)}', space=vmem, size = 0x2000, scoped, tag = 'scratch operand']
  %s0 = inlined_call_operand.vmem [shape: bf16[16,16], index: 0, kind: input, shape index: {}]
  %s1 = inlined_call_operand.vmem [shape: bf16[16,8], index: 1, kind: input, shape index: {}]
  %s2 = inlined_call_operand.hbm [shape: f32[8,128], index: 2, kind: input, shape index: {}]
  %s3 = inlined_call_operand.vmem [shape: f32[1,128], index: 3, kind: input, shape index: {}]
  %s4 = inlined_call_operand.hbm [shape: f32[16,128], index: 4, kind: output, shape index: {}]
  %s5 = sld [smem:[#allocation0]]
  $region38: #{tpu_custom_call.1} parent=0
    _
  %s7 = ssub.s32 1, %s5
  %s8 = scalar_select 0, %s7, %s5
  $region1: #{tpu_custom_call.1} parent=0
    #allocation3 [shape = 'u8[4096]{0}', space=vmem, size = 0x1000, scoped, tag = 'input window, operand 2, single buffered']
    #allocation4 [shape = 's32[1]{0}', space=sflag, size = 0x4, scoped, tag = 'scoped memory for tpu_custom_call.1']
    #allocation5 [shape = 's32[1]{0}', space=sflag, size = 0x4, scoped, tag = 'scoped memory for tpu_custom_call.1']
    #allocation6 [shape = 'u8[8192]{0}', space=vmem, size = 0x2000, scoped, tag = 'output window, operand 0, single buffered']
    %9 = vsyncpa [#allocation4], 0
    %10 = vsyncpa [#allocation5], 0
    // Predicated region
    $region2: #{tpu_custom_call.1} parent=1 // pred_check
      _
    $region3: #{tpu_custom_call.1} parent=1 // pred_check_branch
      %12 = sbr.rel (0) target = $region5
    $region4: #{tpu_custom_call.1} parent=1 // pred_region
      _
    $region5: #{tpu_custom_call.1} parent=1 // pred_fallthru
      _
    // Predicated region
    $region6: #{tpu_custom_call.1} parent=1 // pred_check
      _
    $region7: #{tpu_custom_call.1} parent=1 // pred_check_branch
      %14 = sbr.rel (0) target = $region9
    $region8: #{tpu_custom_call.1} parent=1 // pred_region
      _
    $region9: #{tpu_custom_call.1} parent=1 // pred_fallthru
      _
    // Predicated region
    $region10: #{tpu_custom_call.1} parent=1 // pred_check
      _
    $region11: #{tpu_custom_call.1} parent=1 // pred_check_branch
      %16 = sbr.rel (0) target = $region13
    $region12: #{tpu_custom_call.1} parent=1 // pred_region
      %s18 = ssub.s32 128, 128
      %19 = vsyncadd [#allocation4], %s18
      %s21 = sshll.u32 [#allocation3], 4
      %s22 = int_to_ptr.vmem [resolvable:$true] %s21
      %24 = dma.hbm_to_vmem [thread:$0]  %s2, 128, %s22, [#allocation4]
    $region13: #{tpu_custom_call.1} parent=1 // pred_fallthru
      _
    // Predicated region
    $region14: #{tpu_custom_call.1} parent=1 // pred_check
      _
    $region15: #{tpu_custom_call.1} parent=1 // pred_check_branch
      %26 = sbr.rel (0) target = $region17
    $region16: #{tpu_custom_call.1} parent=1 // pred_region
      _
    $region17: #{tpu_custom_call.1} parent=1 // pred_fallthru
      _
    // Predicated region
    $region18: #{tpu_custom_call.1} parent=1 // pred_check
      _
    $region19: #{tpu_custom_call.1} parent=1 // pred_check_branch
      %28 = sbr.rel (0) target = $region21
    $region20: #{tpu_custom_call.1} parent=1 // pred_region
      %29 = dma.done [#allocation4], 128
    $region21: #{tpu_custom_call.1} parent=1 // pred_fallthru
      _
    %p31 = scmp.eq.s32.totalorder 0, 0
    // Predicated region
    $region22: #{tpu_custom_call.1} parent=1 // pred_check
      %p32 = pneg %p31
    $region23: #{tpu_custom_call.1} parent=1 // pred_check_branch
      %34 = sbr.rel (%p32) target = $region25
    $region24: #{tpu_custom_call.1} parent=1 // pred_region
      %vm35 = vcmask 64512
      %36 = vst.msk [vmem:[#allocation2] sm:$0xff] %vm35, 0.0
      %37 = vst.msk [vmem:[#allocation2 + $0x8] sm:$0xff] %vm35, 0.0
    $region25: #{tpu_custom_call.1} parent=1 // pred_fallthru
      _
    %v38 = vld [vmem:[#allocation2] sm:$0xff]
    %v39 = vld [vmem:[#allocation2 + $0x8] sm:$0xff]
    %v40 = vld [vmem:[%s0] sm:$0xf]
    %v41 = vld [vmem:[%s0 + $0x4] sm:$0xf]
    %v42 = vld [vmem:[%s1] sm:$0xf]
    %v43 = vld [vmem:[%s1 + $0x4] sm:$0xf]
    %v46 = vunpack.c.l.b16 %v40
    %v47 = vunpack.c.l.b16 %v41
    %v48 = vpack.c.b16 %v47, %v46
    %v51 = vunpack.c.l.b16 %v42
    %v52 = vunpack.c.l.b16 %v43
    %v53 = vpack.c.b16 %v52, %v51
    %vm55 = vcmask 130048
    %v57 = vsel %vm55, %v48, 0
    %59 = vmatprep.subr.bf16.mxu0 0
    %60 = vmatpush1.bf16.msra.mxu0 0
    %61 = vmatprep.subr.bf16.mxu0 0
    %62 = vmatpush1.bf16.msra.mxu0 0
    %63 = vmatprep.subr.bf16.mxu0 0
    %64 = vmatpush1.bf16.msra.mxu0 0
    %65 = vmatprep.subr.bf16.mxu0 0
    %66 = vmatpush1.bf16.msra.mxu0 0
    %67 = vmatprep.subr.bf16.mxu0 0
    %68 = vmatpush1.bf16.msra.mxu0 0
    %69 = vmatprep.subr.bf16.mxu0 0
    %70 = vmatpush1.bf16.msra.mxu0 0
    %71 = vmatprep.subr.bf16.mxu0 0
    %72 = vmatpush1.bf16.msra.mxu0 0
    %73 = vmatprep.subr.bf16.mxu0 0
    %74 = vmatpush1.bf16.msra.mxu0 %v53
    %75 = vmatprep.subr.bf16.mxu0 0
    %76 = vmatpush2.bf16.msra.mxu0 0
    %77 = vmatprep.subr.bf16.mxu0 0
    %78 = vmatpush2.bf16.msra.mxu0 0
    %79 = vmatprep.subr.bf16.mxu0 0
    %80 = vmatpush2.bf16.msra.mxu0 0
    %81 = vmatprep.subr.bf16.mxu0 0
    %82 = vmatpush2.bf16.msra.mxu0 0
    %83 = vmatprep.subr.bf16.mxu0 0
    %84 = vmatpush2.bf16.msra.mxu0 0
    %85 = vmatprep.subr.bf16.mxu0 0
    %86 = vmatpush2.bf16.msra.mxu0 0
    %87 = vmatprep.subr.bf16.mxu0 0
    %88 = vmatpush2.bf16.msra.mxu0 0
    %89 = vmatprep.subr.bf16.mxu0 0
    %90 = vmatpush2.bf16.msra.mxu0 0
    %91 = vmatprep.mubr.bf16.mxu0 0
    %92 = vmatmul.mubr.bf16.gmra.mxu0 %v57
    %v93 = vpop.f32.mrf.mxu0
    %v94 = vadd.f32 0.0, %v93
    %v95 = vpop.f32.mrf.mxu0
    %v96 = vpop.f32.mrf.mxu0
    %v97 = vadd.f32 0.0, %v96
    %v98 = vpop.f32.mrf.mxu0
    %99 = vdwg.mxu0
    %v100 = vadd.f32 %v38, %v94
    %v101 = vadd.f32 %v39, %v97
    %vm102 = vcmask 64512
    %103 = vst.msk [vmem:[#allocation2] sm:$0xff] %vm102, %v100
    %104 = vst.msk [vmem:[#allocation2 + $0x8] sm:$0xff] %vm102, %v101
    // Predicated region
    $region26: #{tpu_custom_call.1} parent=1 // pred_check
      %p105 = pneg %p31
    $region27: #{tpu_custom_call.1} parent=1 // pred_check_branch
      %107 = sbr.rel (%p105) target = $region29
    $region28: #{tpu_custom_call.1} parent=1 // pred_region
      %v108 = vld [vmem:[#allocation2] sm:$0xff]
      %v109 = vld [vmem:[#allocation2 + $0x8] sm:$0xff]
      %v110 = vld [vmem:[#allocation3] sm:$0xff]
      %v111 = vld [vmem:[%s3] sm:$0x1]
      %v113 = vlaneseq
      %v114 = vshrl.u32 %v113, 7
      %v115 = vsub.s32 0, %v114
      %v116 = vrot.slane %v111, %v115
      %v119 = vsel %vm102, %v108, 0
      %v122 = vsel %vm102, %v109, 0
      %124 = vmatprep.subr.mxu0 0.0
      %125 = vmatpush1.msra.mxu0 0.0
      %126 = vmatprep.subr.mxu0 0.0
      %127 = vmatpush1.msra.mxu0 0.0
      %128 = vmatprep.subr.mxu0 0.0
      %129 = vmatpush1.msra.mxu0 0.0
      %130 = vmatprep.subr.mxu0 0.0
      %131 = vmatpush1.msra.mxu0 0.0
      %132 = vmatprep.subr.mxu0 0.0
      %133 = vmatpush1.msra.mxu0 0.0
      %134 = vmatprep.subr.mxu0 0.0
      %135 = vmatpush1.msra.mxu0 0.0
      %136 = vmatprep.subr.mxu0 0.0
      %137 = vmatpush1.msra.mxu0 0.0
      %138 = vmatprep.subr.mxu0 0.0
      %139 = vmatpush1.msra.mxu0 0.0
      %140 = vmatprep.subr.mxu0 0.0
      %141 = vmatpush1.msra.mxu0 0.0
      %142 = vmatprep.subr.mxu0 0.0
      %143 = vmatpush1.msra.mxu0 0.0
      %144 = vmatprep.subr.mxu0 0.0
      %145 = vmatpush1.msra.mxu0 0.0
      %146 = vmatprep.subr.mxu0 0.0
      %147 = vmatpush1.msra.mxu0 0.0
      %148 = vmatprep.subr.mxu0 0.0
      %149 = vmatpush1.msra.mxu0 0.0
      %150 = vmatprep.subr.mxu0 0.0
      %151 = vmatpush1.msra.mxu0 0.0
      %152 = vmatprep.subr.mxu0 0.0
      %153 = vmatpush1.msra.mxu0 0.0
      %154 = vmatprep.subr.mxu0 0.0
      %155 = vmatpush1.msra.mxu0 %v110
      %156 = vmatprep.subr.mxu0 0.0
      %157 = vmatpush2.msra.mxu0 0.0
      %158 = vmatprep.subr.mxu0 0.0
      %159 = vmatpush2.msra.mxu0 0.0
      %160 = vmatprep.subr.mxu0 0.0
      %161 = vmatpush2.msra.mxu0 0.0
      %162 = vmatprep.subr.mxu0 0.0
      %163 = vmatpush2.msra.mxu0 0.0
      %164 = vmatprep.subr.mxu0 0.0
      %165 = vmatpush2.msra.mxu0 0.0
      %166 = vmatprep.subr.mxu0 0.0
      %167 = vmatpush2.msra.mxu0 0.0
      %168 = vmatprep.subr.mxu0 0.0
      %169 = vmatpush2.msra.mxu0 0.0
      %170 = vmatprep.subr.mxu0 0.0
      %171 = vmatpush2.msra.mxu0 0.0
      %172 = vmatprep.subr.mxu0 0.0
      %173 = vmatpush2.msra.mxu0 0.0
      %174 = vmatprep.subr.mxu0 0.0
      %175 = vmatpush2.msra.mxu0 0.0
      %176 = vmatprep.subr.mxu0 0.0
      %177 = vmatpush2.msra.mxu0 0.0
      %178 = vmatprep.subr.mxu0 0.0
      %179 = vmatpush2.msra.mxu0 0.0
      %180 = vmatprep.subr.mxu0 0.0
      %181 = vmatpush2.msra.mxu0 0.0
      %182 = vmatprep.subr.mxu0 0.0
      %183 = vmatpush2.msra.mxu0 0.0
      %184 = vmatprep.subr.mxu0 0.0
      %185 = vmatpush2.msra.mxu0 0.0
      %186 = vmatprep.subr.mxu0 0.0
      %187 = vmatpush2.msra.mxu0 0.0
      %188 = vmatprep.mubr.f32.mxu0 0.0
      %189 = vmatmul.mubr.f32.gmra.mxu0 %v119
      %v190 = vpop.f32.mrf.mxu0
      %v191 = vadd.f32 %v116, %v190
      %v192 = vpop.f32.mrf.mxu0
      %193 = vmatprep.mubr.f32.mxu0 0.0
      %194 = vmatmul.mubr.f32.gmra.mxu0 %v122
      %v195 = vpop.f32.mrf.mxu0
      %v196 = vadd.f32 %v116, %v195
      %v197 = vpop.f32.mrf.mxu0
      %198 = vdwg.mxu0
      %v199 = vmax.f32 %v191, 0.0
      %v200 = vmax.f32 %v196, 0.0
      %201 = vst [vmem:[#allocation6] sm:$0xff] %v199
      %202 = vst [vmem:[#allocation6 + $0x8] sm:$0xff] %v200
    $region29: #{tpu_custom_call.1} parent=1 // pred_fallthru
      _
    // Predicated region
    $region30: #{tpu_custom_call.1} parent=1 // pred_check
      _
    $region31: #{tpu_custom_call.1} parent=1 // pred_check_branch
      %204 = sbr.rel (0) target = $region33
    $region32: #{tpu_custom_call.1} parent=1 // pred_region
      %s206 = ssub.s32 256, 256
      %207 = vsyncadd [#allocation5], %s206
      %s208 = sshll.u32 [#allocation6], 4
      %s209 = int_to_ptr.vmem [resolvable:$true] %s208
      %214 = dma.vmem_to_hbm [thread:$0]  %s209, 256, %s4, [#allocation5], 128, 128, 8
    $region33: #{tpu_custom_call.1} parent=1 // pred_fallthru
      _
    // Predicated region
    $region34: #{tpu_custom_call.1} parent=1 // pred_check
      _
    $region35: #{tpu_custom_call.1} parent=1 // pred_check_branch
      %216 = sbr.rel (0) target = $region37
    $region36: #{tpu_custom_call.1} parent=1 // pred_region
      %217 = dma.done [#allocation5], 256
    $region37: #{tpu_custom_call.1} parent=1 // pred_fallthru
      _
    %218 = vsyncpa [#allocation4], 1
    %219 = vsyncpa [#allocation5], 1

</llo_original>
